<compile_context>
chip_gen: v7x
topology: tpu7x:2x2x1
jax: 0.10.0
libtpu: 0.0.40
codegen_flags: <defaults>
</compile_context>

<pallas_src>
import jax
import jax.numpy as jnp
from jax.experimental import pallas as pl
from jax.experimental.pallas import tpu as pltpu

LANE = 128      # lane width of a vreg
SUBLANE = 8     # sublane width of a vreg


def mlp_kernel(x_ref, w1_ref, w2_ref, w3_ref, b_ref, o_ref):
    # Feature dims are padded to 128 lanes; padded columns carry zeros through
    # ReLU so the math on the real columns is unchanged.
    x = x_ref[...]
    # fc1 + ReLU
    h1 = jnp.dot(x, w1_ref[...], preferred_element_type=jnp.float32) + b_ref[0:1, :]
    h1 = jnp.maximum(h1, 0.0)
    # fc2 + ReLU
    h2 = jnp.dot(h1, w2_ref[...], preferred_element_type=jnp.float32) + b_ref[1:2, :]
    h2 = jnp.maximum(h2, 0.0)
    # fc3 (no activation); store only the real output columns so only
    # B * out_size * 4 bytes ever go back to HBM.
    h3 = jnp.dot(h2, w3_ref[...], preferred_element_type=jnp.float32) + b_ref[2:3, :]
    o_ref[...] = h3[:, :o_ref.shape[1]].astype(o_ref.dtype)


def _round_up(n, m):
    return (n + m - 1) // m * m


def simple_model_forward(x, params, *, tile_m=1024):
    """3-layer MLP forward: batch-streamed Pallas kernel, VMEM-resident weights."""
    w1, b1, w2, b2, w3, b3 = params
    in_size = w1.shape[0]
    h1_size, h2_size, out_size = w1.shape[1], w2.shape[1], w3.shape[1]
    assert x.shape[1] == in_size
    assert max(h1_size, h2_size, out_size) <= LANE

    # --- pad feature dims to the 128-lane width (zero padding keeps math exact) ---
    Hp = LANE
    w1p = jnp.zeros((in_size, Hp), jnp.float32).at[:, :h1_size].set(w1)
    w2p = jnp.zeros((Hp, Hp), jnp.float32).at[:h1_size, :h2_size].set(w2)
    w3p = jnp.zeros((Hp, Hp), jnp.float32).at[:h2_size, :out_size].set(w3)
    bp = jnp.zeros((3, Hp), jnp.float32)
    bp = bp.at[0, :h1_size].set(b1.reshape(-1))
    bp = bp.at[1, :h2_size].set(b2.reshape(-1))
    bp = bp.at[2, :out_size].set(b3.reshape(-1))

    # --- batch tiling: big tiles amortize per-step overhead; cap so big batches
    #     get >= 4 grid steps (megacore + double buffering on v7x). No padding
    #     copy of x: ragged last block handled by Pallas, padded rows are
    #     independent and never written back. ---
    B = x.shape[0]
    tm = min(tile_m,
             _round_up(B, SUBLANE),
             _round_up(pl.cdiv(B, 4), SUBLANE))
    grid = (pl.cdiv(B, tm),)

    flops = 2 * B * (in_size * Hp + Hp * Hp + Hp * Hp)
    bytes_accessed = 4 * (B * in_size                              # x read
                          + in_size * Hp + 2 * Hp * Hp + 3 * Hp    # resident weights/biases
                          + B * out_size)                          # real output writeback

    out = pl.pallas_call(
        mlp_kernel,
        out_shape=jax.ShapeDtypeStruct((B, out_size), jnp.float32),
        grid_spec=pltpu.PrefetchScalarGridSpec(
            num_scalar_prefetch=0,
            grid=grid,
            in_specs=[
                pl.BlockSpec((tm, in_size), lambda i: (i, 0)),   # streamed activations
                pl.BlockSpec((in_size, Hp), lambda i: (0, 0)),   # W1: resident
                pl.BlockSpec((Hp, Hp), lambda i: (0, 0)),        # W2: resident
                pl.BlockSpec((Hp, Hp), lambda i: (0, 0)),        # W3: resident
                pl.BlockSpec((3, Hp), lambda i: (0, 0)),         # packed biases: resident
            ],
            out_specs=pl.BlockSpec((tm, out_size), lambda i: (i, 0)),
        ),
        compiler_params=pltpu.CompilerParams(
            dimension_semantics=("parallel",),      # batch axis shards across TCs on v7x
        ),
        cost_estimate=pl.CostEstimate(
            flops=flops, transcendentals=0, bytes_accessed=bytes_accessed),
    )(x, w1p, w2p, w3p, bp)

    return out


def init_params(key, input_size=10, hidden_size=50, output_size=1):
    """Deterministic init mimicking nn.Linear's uniform(-1/sqrt(fan_in), 1/sqrt(fan_in))."""
    def linear(k, fan_in, fan_out):
        kw, kb = jax.random.split(k)
        bound = 1.0 / jnp.sqrt(jnp.float32(fan_in))
        w = jax.random.uniform(kw, (fan_in, fan_out), jnp.float32, -bound, bound)
        b = jax.random.uniform(kb, (1, fan_out), jnp.float32, -bound, bound)
        return w, b

    k1, k2, k3 = jax.random.split(key, 3)
    w1, b1 = linear(k1, input_size, hidden_size)
    w2, b2 = linear(k2, hidden_size, hidden_size // 2)
    w3, b3 = linear(k3, hidden_size // 2, output_size)
    return (w1, b1, w2, b2, w3, b3)


if __name__ == "__main__":
    key = jax.random.PRNGKey(0)
    k_param, k_x = jax.random.split(key)

    input_size, hidden_size, output_size = 10, 50, 1
    batch = 8

    params = init_params(k_param, input_size, hidden_size, output_size)
    x = jax.random.normal(k_x, (batch, input_size), jnp.float32)

    out = simple_model_forward(x, params)
    out = jax.block_until_ready(out)

    # Reference check in plain JAX (same math as the PyTorch module).
    w1, b1, w2, b2, w3, b3 = params
    ref = jnp.maximum(x @ w1 + b1, 0.0)
    ref = jnp.maximum(ref @ w2 + b2, 0.0)
    ref = ref @ w3 + b3
    assert out.shape == (batch, output_size)
    assert jnp.allclose(out, ref, atol=1e-5, rtol=1e-5)

    print("KERNEL_OK")
</pallas_src>

<mosaic_0001>
module attributes {stable_mosaic.version = 11 : i64} {
  func.func @mlp_kernel(%arg0: i32, %arg1: memref<8x10xf32, #tpu.memory_space<vmem>>, %arg2: memref<10x128xf32, #tpu.memory_space<vmem>>, %arg3: memref<128x128xf32, #tpu.memory_space<vmem>>, %arg4: memref<128x128xf32, #tpu.memory_space<vmem>>, %arg5: memref<3x128xf32, #tpu.memory_space<vmem>>, %arg6: memref<8x1xf32, #tpu.memory_space<vmem>>) attributes {dimension_semantics = [#tpu.dimension_semantics<parallel>], iteration_bounds = array<i64: 1>, scalar_prefetch = 0 : i64, scratch_operands = 0 : i64, tpu.core_type = #tpu.core_type<tc>, window_params = [{transform_indices = @transform_0, window_bounds = array<i64: 8, 10>}, {pipeline_mode = #tpu.pipeline_mode<synchronous>, transform_indices = @transform_1, window_bounds = array<i64: 10, 128>}, {pipeline_mode = #tpu.pipeline_mode<synchronous>, transform_indices = @transform_2, window_bounds = array<i64: 128, 128>}, {pipeline_mode = #tpu.pipeline_mode<synchronous>, transform_indices = @transform_3, window_bounds = array<i64: 128, 128>}, {pipeline_mode = #tpu.pipeline_mode<synchronous>, transform_indices = @transform_4, window_bounds = array<i64: 3, 128>}, {transform_indices = @transform_5, window_bounds = array<i64: 8, 1>}]} {
    %c0 = arith.constant 0 : index
    %c0_0 = arith.constant 0 : index
    %0 = vector.load %arg1[%c0, %c0_0] : memref<8x10xf32, #tpu.memory_space<vmem>>, vector<8x10xf32>
    %c0_1 = arith.constant 0 : index
    %c0_2 = arith.constant 0 : index
    %1 = vector.load %arg2[%c0_1, %c0_2] : memref<10x128xf32, #tpu.memory_space<vmem>>, vector<10x128xf32>
    %cst = arith.constant dense<0.000000e+00> : vector<8x128xf32>
    %2 = tpu.matmul %0, %1, %cst {dimension_numbers = #tpu.dot_dimension_numbers<[1], [0], [0], [1], [0, 0, 1, 1], [], []>} : vector<8x10xf32>, vector<10x128xf32>, vector<8x128xf32> -> vector<8x128xf32>
    %c0_3 = arith.constant 0 : index
    %c0_4 = arith.constant 0 : index
    %3 = vector.load %arg5[%c0_3, %c0_4] : memref<3x128xf32, #tpu.memory_space<vmem>>, vector<1x128xf32>
    %4 = vector.broadcast %3 : vector<1x128xf32> to vector<8x128xf32>
    %5 = arith.addf %2, %4 : vector<8x128xf32>
    %cst_5 = arith.constant 0.000000e+00 : f32
    %6 = vector.broadcast %cst_5 : f32 to vector<8x128xf32>
    %7 = arith.maximumf %5, %6 : vector<8x128xf32>
    %c0_6 = arith.constant 0 : index
    %c0_7 = arith.constant 0 : index
    %8 = vector.load %arg3[%c0_6, %c0_7] : memref<128x128xf32, #tpu.memory_space<vmem>>, vector<128x128xf32>
    %cst_8 = arith.constant dense<0.000000e+00> : vector<8x128xf32>
    %9 = tpu.matmul %7, %8, %cst_8 {dimension_numbers = #tpu.dot_dimension_numbers<[1], [0], [0], [1], [0, 0, 1, 1], [], []>} : vector<8x128xf32>, vector<128x128xf32>, vector<8x128xf32> -> vector<8x128xf32>
    %c1 = arith.constant 1 : index
    %c0_9 = arith.constant 0 : index
    %10 = vector.load %arg5[%c1, %c0_9] : memref<3x128xf32, #tpu.memory_space<vmem>>, vector<1x128xf32>
    %11 = vector.broadcast %10 : vector<1x128xf32> to vector<8x128xf32>
    %12 = arith.addf %9, %11 : vector<8x128xf32>
    %cst_10 = arith.constant 0.000000e+00 : f32
    %13 = vector.broadcast %cst_10 : f32 to vector<8x128xf32>
    %14 = arith.maximumf %12, %13 : vector<8x128xf32>
    %c0_11 = arith.constant 0 : index
    %c0_12 = arith.constant 0 : index
    %15 = vector.load %arg4[%c0_11, %c0_12] : memref<128x128xf32, #tpu.memory_space<vmem>>, vector<128x128xf32>
    %cst_13 = arith.constant dense<0.000000e+00> : vector<8x128xf32>
    %16 = tpu.matmul %14, %15, %cst_13 {dimension_numbers = #tpu.dot_dimension_numbers<[1], [0], [0], [1], [0, 0, 1, 1], [], []>} : vector<8x128xf32>, vector<128x128xf32>, vector<8x128xf32> -> vector<8x128xf32>
    %c2 = arith.constant 2 : index
    %c0_14 = arith.constant 0 : index
    %17 = vector.load %arg5[%c2, %c0_14] : memref<3x128xf32, #tpu.memory_space<vmem>>, vector<1x128xf32>
    %18 = vector.broadcast %17 : vector<1x128xf32> to vector<8x128xf32>
    %19 = arith.addf %16, %18 : vector<8x128xf32>
    %20 = vector.extract_strided_slice %19 {offsets = [0, 0], sizes = [8, 1], strides = [1, 1]} : vector<8x128xf32> to vector<8x1xf32>
    %c0_15 = arith.constant 0 : index
    %c0_16 = arith.constant 0 : index
    %21 = vector.load %arg6[%c0_15, %c0_16] : memref<8x1xf32, #tpu.memory_space<vmem>>, vector<8x1xf32>
    tpu.vector_store %arg6[%c0_15, %c0_16], %20 {strides = array<i32>} : memref<8x1xf32, #tpu.memory_space<vmem>>, vector<8x1xf32>,
    return
  }
  func.func @transform_0(%arg0: i32) -> (i32, i32) {
    %c0_i32 = arith.constant 0 : i32
    %c0_i32_0 = arith.constant 0 : i32
    return %arg0, %c0_i32 : i32, i32
  }
  func.func @transform_1(%arg0: i32) -> (i32, i32) {
    %c0_i32 = arith.constant 0 : i32
    %c0_i32_0 = arith.constant 0 : i32
    %c0_i32_1 = arith.constant 0 : i32
    return %c0_i32, %c0_i32_0 : i32, i32
  }
  func.func @transform_2(%arg0: i32) -> (i32, i32) {
    %c0_i32 = arith.constant 0 : i32
    %c0_i32_0 = arith.constant 0 : i32
    %c0_i32_1 = arith.constant 0 : i32
    return %c0_i32, %c0_i32_0 : i32, i32
  }
  func.func @transform_3(%arg0: i32) -> (i32, i32) {
    %c0_i32 = arith.constant 0 : i32
    %c0_i32_0 = arith.constant 0 : i32
    %c0_i32_1 = arith.constant 0 : i32
    return %c0_i32, %c0_i32_0 : i32, i32
  }
  func.func @transform_4(%arg0: i32) -> (i32, i32) {
    %c0_i32 = arith.constant 0 : i32
    %c0_i32_0 = arith.constant 0 : i32
    %c0_i32_1 = arith.constant 0 : i32
    return %c0_i32, %c0_i32_0 : i32, i32
  }
  func.func @transform_5(%arg0: i32) -> (i32, i32) {
    %c0_i32 = arith.constant 0 : i32
    %c0_i32_0 = arith.constant 0 : i32
    return %arg0, %c0_i32 : i32, i32
  }
}

</mosaic_0001>

<llo_original>
// kernel: tpu_custom_call.1
$region0: #{tpu_custom_call.1}
  #allocation0 [shape = 'u32[]', space=smem, size = 0x4, offset = 0x4, fixed_abs, tag = 'smem constant byte address 0x4 - core index']
  #allocation1 [shape = 'u32[144,128]{1,0:T(1,128)}', space=vmem, size = 0x12000, scoped, tag = 'internal scratch']
  %s0 = inlined_call_operand.hbm [shape: f32[8,10], index: 0, kind: input, shape index: {}]
  %s1 = inlined_call_operand.hbm [shape: f32[10,128], index: 1, kind: input, shape index: {}]
  %s2 = inlined_call_operand.hbm [shape: f32[128,128], index: 2, kind: input, shape index: {}]
  %s3 = inlined_call_operand.hbm [shape: f32[128,128], index: 3, kind: input, shape index: {}]
  %s4 = inlined_call_operand.vmem [shape: f32[3,128], index: 4, kind: input, shape index: {}]
  %s5 = inlined_call_operand.vmem [shape: f32[8,1], index: 5, kind: output, shape index: {}]
  %s6 = sld [smem:[#allocation0]]
  $region46: #{tpu_custom_call.1} parent=0
    _
  %s8 = ssub.s32 1, %s6
  %s9 = scalar_select 0, %s8, %s6
  $region1: #{tpu_custom_call.1} parent=0
    #allocation2 [shape = 'u8[4096]{0}', space=vmem, size = 0x1000, scoped, tag = 'input window, operand 0, single buffered']
    #allocation3 [shape = 's32[1]{0}', space=sflag, size = 0x4, scoped, tag = 'scoped memory for tpu_custom_call.1']
    #allocation4 [shape = 'u8[8192]{0}', space=vmem, size = 0x2000, scoped, tag = 'input window, operand 1, single buffered']
    #allocation5 [shape = 's32[1]{0}', space=sflag, size = 0x4, scoped, tag = 'scoped memory for tpu_custom_call.1']
    #allocation6 [shape = 'u8[65536]{0}', space=vmem, size = 0x10000, scoped, tag = 'input window, operand 2, single buffered']
    #allocation7 [shape = 'u8[65536]{0}', space=vmem, size = 0x10000, scoped, tag = 'input window, operand 3, single buffered']
    #allocation8 [shape = 's32[1]{0}', space=sflag, size = 0x4, scoped, tag = 'scoped memory for tpu_custom_call.1']
    %10 = vsyncpa [#allocation3], 0
    %11 = vsyncpa [#allocation5], 0
    %12 = vsyncpa [#allocation8], 0
    // Predicated region
    $region2: #{tpu_custom_call.1} parent=1 // pred_check
      _
    $region3: #{tpu_custom_call.1} parent=1 // pred_check_branch
      %14 = sbr.rel (0) target = $region5
    $region4: #{tpu_custom_call.1} parent=1 // pred_region
      %s16 = ssub.s32 128, 128
      %17 = vsyncadd [#allocation3], %s16
      %s19 = sshll.u32 [#allocation2], 4
      %s20 = int_to_ptr.vmem [resolvable:$true] %s19
      %22 = dma.hbm_to_vmem [thread:$0]  %s0, 128, %s20, [#allocation3]
    $region5: #{tpu_custom_call.1} parent=1 // pred_fallthru
      _
    // Predicated region
    $region6: #{tpu_custom_call.1} parent=1 // pred_check
      _
    $region7: #{tpu_custom_call.1} parent=1 // pred_check_branch
      %24 = sbr.rel (0) target = $region9
    $region8: #{tpu_custom_call.1} parent=1 // pred_region
      %s26 = ssub.s32 256, 256
      %27 = vsyncadd [#allocation5], %s26
      %s28 = sshll.u32 [#allocation4], 4
      %s29 = int_to_ptr.vmem [resolvable:$true] %s28
      %34 = dma.hbm_to_vmem [thread:$0]  %s1, 256, %s29, [#allocation5], 128, 128, 8
    $region9: #{tpu_custom_call.1} parent=1 // pred_fallthru
      _
    // Predicated region
    $region10: #{tpu_custom_call.1} parent=1 // pred_check
      _
    $region11: #{tpu_custom_call.1} parent=1 // pred_check_branch
      %36 = sbr.rel (0) target = $region13
    $region12: #{tpu_custom_call.1} parent=1 // pred_region
      %s38 = ssub.s32 2048, 2048
      %39 = vsyncadd [#allocation5], %s38
      %s40 = sshll.u32 [#allocation6], 4
      %s41 = int_to_ptr.vmem [resolvable:$true] %s40
      %46 = dma.hbm_to_vmem [thread:$0]  %s2, 2048, %s41, [#allocation5], 128, 128, 8
    $region13: #{tpu_custom_call.1} parent=1 // pred_fallthru
      _
    // Predicated region
    $region14: #{tpu_custom_call.1} parent=1 // pred_check
      _
    $region15: #{tpu_custom_call.1} parent=1 // pred_check_branch
      %48 = sbr.rel (0) target = $region17
    $region16: #{tpu_custom_call.1} parent=1 // pred_region
      %s50 = ssub.s32 2048, 2048
      %51 = vsyncadd [#allocation8], %s50
      %s52 = sshll.u32 [#allocation7], 4
      %s53 = int_to_ptr.vmem [resolvable:$true] %s52
      %58 = dma.hbm_to_vmem [thread:$0]  %s3, 2048, %s53, [#allocation8], 128, 128, 8
    $region17: #{tpu_custom_call.1} parent=1 // pred_fallthru
      _
    // Predicated region
    $region18: #{tpu_custom_call.1} parent=1 // pred_check
      _
    $region19: #{tpu_custom_call.1} parent=1 // pred_check_branch
      %60 = sbr.rel (0) target = $region21
    $region20: #{tpu_custom_call.1} parent=1 // pred_region
      _
    $region21: #{tpu_custom_call.1} parent=1 // pred_fallthru
      _
    // Predicated region
    $region22: #{tpu_custom_call.1} parent=1 // pred_check
      _
    $region23: #{tpu_custom_call.1} parent=1 // pred_check_branch
      %62 = sbr.rel (0) target = $region25
    $region24: #{tpu_custom_call.1} parent=1 // pred_region
      %63 = dma.done [#allocation3], 128
    $region25: #{tpu_custom_call.1} parent=1 // pred_fallthru
      _
    // Predicated region
    $region26: #{tpu_custom_call.1} parent=1 // pred_check
      _
    $region27: #{tpu_custom_call.1} parent=1 // pred_check_branch
      %65 = sbr.rel (0) target = $region29
    $region28: #{tpu_custom_call.1} parent=1 // pred_region
      %66 = dma.done [#allocation5], 256
    $region29: #{tpu_custom_call.1} parent=1 // pred_fallthru
      _
    // Predicated region
    $region30: #{tpu_custom_call.1} parent=1 // pred_check
      _
    $region31: #{tpu_custom_call.1} parent=1 // pred_check_branch
      %68 = sbr.rel (0) target = $region33
    $region32: #{tpu_custom_call.1} parent=1 // pred_region
      %69 = dma.done [#allocation5], 2048
    $region33: #{tpu_custom_call.1} parent=1 // pred_fallthru
      _
    // Predicated region
    $region34: #{tpu_custom_call.1} parent=1 // pred_check
      _
    $region35: #{tpu_custom_call.1} parent=1 // pred_check_branch
      %71 = sbr.rel (0) target = $region37
    $region36: #{tpu_custom_call.1} parent=1 // pred_region
      %72 = dma.done [#allocation8], 2048
    $region37: #{tpu_custom_call.1} parent=1 // pred_fallthru
      _
    %v73 = vld [vmem:[#allocation2] sm:$0xff]
    %v74 = vld [vmem:[#allocation4] sm:$0xff]
    %v75 = vld [vmem:[#allocation4 + $0x8] sm:$0x3]
    %v76 = vld [vmem:[%s4] sm:$0x1]
    %v77 = vlaneseq
    %v78 = vshrl.u32 %v77, 7
    %v79 = vsub.s32 0, %v78
    %v80 = vrot.slane %v76, %v79
    %vm81 = vcmask 80896
    %v83 = vsel %vm81, %v73, 0
    %vm85 = vcmask 1041408
    %v87 = vsel %vm85, %v75, 0
    %89 = vmatprep.subr.mxu0 0.0
    %90 = vmatpush1.msra.mxu0 %v74
    %91 = vmatprep.subr.mxu0 0.0
    %92 = vmatpush1.msra.mxu0 %v87
    %93 = vmatprep.subr.mxu0 0.0
    %94 = vmatpush1.msra.mxu0 0.0
    %95 = vmatprep.subr.mxu0 0.0
    %96 = vmatpush1.msra.mxu0 0.0
    %97 = vmatprep.subr.mxu0 0.0
    %98 = vmatpush1.msra.mxu0 0.0
    %99 = vmatprep.subr.mxu0 0.0
    %100 = vmatpush1.msra.mxu0 0.0
    %101 = vmatprep.subr.mxu0 0.0
    %102 = vmatpush1.msra.mxu0 0.0
    %103 = vmatprep.subr.mxu0 0.0
    %104 = vmatpush1.msra.mxu0 0.0
    %105 = vmatprep.subr.mxu0 0.0
    %106 = vmatpush1.msra.mxu0 0.0
    %107 = vmatprep.subr.mxu0 0.0
    %108 = vmatpush1.msra.mxu0 0.0
    %109 = vmatprep.subr.mxu0 0.0
    %110 = vmatpush1.msra.mxu0 0.0
    %111 = vmatprep.subr.mxu0 0.0
    %112 = vmatpush1.msra.mxu0 0.0
    %113 = vmatprep.subr.mxu0 0.0
    %114 = vmatpush1.msra.mxu0 0.0
    %115 = vmatprep.subr.mxu0 0.0
    %116 = vmatpush1.msra.mxu0 0.0
    %117 = vmatprep.subr.mxu0 0.0
    %118 = vmatpush1.msra.mxu0 0.0
    %119 = vmatprep.subr.mxu0 0.0
    %120 = vmatpush1.msra.mxu0 0.0
    %121 = vmatprep.subr.mxu0 0.0
    %122 = vmatpush1.msra.mxu0 0.0
    %123 = vmatprep.subr.mxu0 0.0
    %124 = vmatpush1.msra.mxu0 0.0
    %125 = vmatprep.subr.mxu0 0.0
    %126 = vmatpush1.msra.mxu0 0.0
    %127 = vmatprep.subr.mxu0 0.0
    %128 = vmatpush1.msra.mxu0 0.0
    %129 = vmatprep.subr.mxu0 0.0
    %130 = vmatpush1.msra.mxu0 0.0
    %131 = vmatprep.subr.mxu0 0.0
    %132 = vmatpush1.msra.mxu0 0.0
    %133 = vmatprep.subr.mxu0 0.0
    %134 = vmatpush1.msra.mxu0 0.0
    %135 = vmatprep.subr.mxu0 0.0
    %136 = vmatpush1.msra.mxu0 0.0
    %137 = vmatprep.subr.mxu0 0.0
    %138 = vmatpush1.msra.mxu0 0.0
    %139 = vmatprep.subr.mxu0 0.0
    %140 = vmatpush1.msra.mxu0 0.0
    %141 = vmatprep.subr.mxu0 0.0
    %142 = vmatpush1.msra.mxu0 0.0
    %143 = vmatprep.subr.mxu0 0.0
    %144 = vmatpush1.msra.mxu0 0.0
    %145 = vmatprep.subr.mxu0 0.0
    %146 = vmatpush1.msra.mxu0 0.0
    %147 = vmatprep.subr.mxu0 0.0
    %148 = vmatpush1.msra.mxu0 0.0
    %149 = vmatprep.subr.mxu0 0.0
    %150 = vmatpush1.msra.mxu0 0.0
    %151 = vmatprep.subr.mxu0 0.0
    %152 = vmatpush1.msra.mxu0 0.0
    %153 = vmatprep.mubr.f32.mxu0 0.0
    %154 = vmatmul.mubr.f32.gmra.mrb[0].mxu0 %v83
    %v155 = vpop.f32.mrb[0].mxu0
    %v156 = vadd.f32 %v80, %v155
    %v157 = vpop.f32.mrb[0].mxu0
    %158 = vdwg.mxu0
    %v159 = vmax.f32 %v156, 0.0
    %v160 = vld [vmem:[#allocation6] sm:$0xff]
    %v161 = vld [vmem:[#allocation6 + $0x8] sm:$0xff]
    %v162 = vld [vmem:[#allocation6 + $0x10] sm:$0xff]
    %v163 = vld [vmem:[#allocation6 + $0x18] sm:$0xff]
    %v164 = vld [vmem:[#allocation6 + $0x20] sm:$0xff]
    %v165 = vld [vmem:[#allocation6 + $0x28] sm:$0xff]
    %v166 = vld [vmem:[#allocation6 + $0x30] sm:$0xff]
    %v167 = vld [vmem:[#allocation6 + $0x38] sm:$0xff]
    %v168 = vld [vmem:[#allocation6 + $0x40] sm:$0xff]
    %v169 = vld [vmem:[#allocation6 + $0x48] sm:$0xff]
    %v170 = vld [vmem:[#allocation6 + $0x50] sm:$0xff]
    %v171 = vld [vmem:[#allocation6 + $0x58] sm:$0xff]
    %v172 = vld [vmem:[#allocation6 + $0x60] sm:$0xff]
    %v173 = vld [vmem:[#allocation6 + $0x68] sm:$0xff]
    %v174 = vld [vmem:[#allocation6 + $0x70] sm:$0xff]
    %v175 = vld [vmem:[#allocation6 + $0x78] sm:$0xff]
    %v176 = vld [vmem:[%s4 + $0x1] sm:$0x1]
    %v177 = vlaneseq
    %v178 = vshrl.u32 %v177, 7
    %v179 = vsub.s32 0, %v178
    %v180 = vrot.slane %v176, %v179
    %181 = vmatprep.subr.mxu0 0.0
    %182 = vmatpush1.msra.mxu0 %v160
    %183 = vmatprep.subr.mxu0 0.0
    %184 = vmatpush1.msra.mxu0 %v161
    %185 = vmatprep.subr.mxu0 0.0
    %186 = vmatpush1.msra.mxu0 %v162
    %187 = vmatprep.subr.mxu0 0.0
    %188 = vmatpush1.msra.mxu0 %v163
    %189 = vmatprep.subr.mxu0 0.0
    %190 = vmatpush1.msra.mxu0 %v164
    %191 = vmatprep.subr.mxu0 0.0
    %192 = vmatpush1.msra.mxu0 %v165
    %193 = vmatprep.subr.mxu0 0.0
    %194 = vmatpush1.msra.mxu0 %v166
    %195 = vmatprep.subr.mxu0 0.0
    %196 = vmatpush1.msra.mxu0 %v167
    %197 = vmatprep.subr.mxu0 0.0
    %198 = vmatpush1.msra.mxu0 %v168
    %199 = vmatprep.subr.mxu0 0.0
    %200 = vmatpush1.msra.mxu0 %v169
    %201 = vmatprep.subr.mxu0 0.0
    %202 = vmatpush1.msra.mxu0 %v170
    %203 = vmatprep.subr.mxu0 0.0
    %204 = vmatpush1.msra.mxu0 %v171
    %205 = vmatprep.subr.mxu0 0.0
    %206 = vmatpush1.msra.mxu0 %v172
    %207 = vmatprep.subr.mxu0 0.0
    %208 = vmatpush1.msra.mxu0 %v173
    %209 = vmatprep.subr.mxu0 0.0
    %210 = vmatpush1.msra.mxu0 %v174
    %211 = vmatprep.subr.mxu0 0.0
    %212 = vmatpush1.msra.mxu0 %v175
    %213 = vmatprep.subr.mxu0 0.0
    %214 = vmatpush1.msra.mxu0 0.0
    %215 = vmatprep.subr.mxu0 0.0
    %216 = vmatpush1.msra.mxu0 0.0
    %217 = vmatprep.subr.mxu0 0.0
    %218 = vmatpush1.msra.mxu0 0.0
    %219 = vmatprep.subr.mxu0 0.0
    %220 = vmatpush1.msra.mxu0 0.0
    %221 = vmatprep.subr.mxu0 0.0
    %222 = vmatpush1.msra.mxu0 0.0
    %223 = vmatprep.subr.mxu0 0.0
    %224 = vmatpush1.msra.mxu0 0.0
    %225 = vmatprep.subr.mxu0 0.0
    %226 = vmatpush1.msra.mxu0 0.0
    %227 = vmatprep.subr.mxu0 0.0
    %228 = vmatpush1.msra.mxu0 0.0
    %229 = vmatprep.subr.mxu0 0.0
    %230 = vmatpush1.msra.mxu0 0.0
    %231 = vmatprep.subr.mxu0 0.0
    %232 = vmatpush1.msra.mxu0 0.0
    %233 = vmatprep.subr.mxu0 0.0
    %234 = vmatpush1.msra.mxu0 0.0
    %235 = vmatprep.subr.mxu0 0.0
    %236 = vmatpush1.msra.mxu0 0.0
    %237 = vmatprep.subr.mxu0 0.0
    %238 = vmatpush1.msra.mxu0 0.0
    %239 = vmatprep.subr.mxu0 0.0
    %240 = vmatpush1.msra.mxu0 0.0
    %241 = vmatprep.subr.mxu0 0.0
    %242 = vmatpush1.msra.mxu0 0.0
    %243 = vmatprep.subr.mxu0 0.0
    %244 = vmatpush1.msra.mxu0 0.0
    %245 = vmatprep.mubr.f32.mxu0 0.0
    %246 = vmatmul.mubr.f32.gmra.mrb[0].mxu0 %v159
    %v247 = vpop.f32.mrb[0].mxu0
    %v248 = vadd.f32 %v180, %v247
    %v249 = vpop.f32.mrb[0].mxu0
    %250 = vdwg.mxu0
    %v251 = vmax.f32 %v248, 0.0
    %v252 = vld [vmem:[#allocation7] sm:$0xff]
    %v253 = vld [vmem:[#allocation7 + $0x8] sm:$0xff]
    %v254 = vld [vmem:[#allocation7 + $0x10] sm:$0xff]
    %v255 = vld [vmem:[#allocation7 + $0x18] sm:$0xff]
    %v256 = vld [vmem:[#allocation7 + $0x20] sm:$0xff]
    %v257 = vld [vmem:[#allocation7 + $0x28] sm:$0xff]
    %v258 = vld [vmem:[#allocation7 + $0x30] sm:$0xff]
    %v259 = vld [vmem:[#allocation7 + $0x38] sm:$0xff]
    %v260 = vld [vmem:[#allocation7 + $0x40] sm:$0xff]
    %v261 = vld [vmem:[#allocation7 + $0x48] sm:$0xff]
    %v262 = vld [vmem:[#allocation7 + $0x50] sm:$0xff]
    %v263 = vld [vmem:[#allocation7 + $0x58] sm:$0xff]
    %v264 = vld [vmem:[#allocation7 + $0x60] sm:$0xff]
    %v265 = vld [vmem:[#allocation7 + $0x68] sm:$0xff]
    %v266 = vld [vmem:[#allocation7 + $0x70] sm:$0xff]
    %v267 = vld [vmem:[#allocation7 + $0x78] sm:$0xff]
    %v268 = vld [vmem:[%s4 + $0x2] sm:$0x1]
    %v269 = vlaneseq
    %v270 = vshrl.u32 %v269, 7
    %v271 = vsub.s32 0, %v270
    %v272 = vrot.slane %v268, %v271
    %273 = vmatprep.subr.mxu0 0.0
    %274 = vmatpush1.msra.mxu0 %v252
    %275 = vmatprep.subr.mxu0 0.0
    %276 = vmatpush1.msra.mxu0 %v253
    %277 = vmatprep.subr.mxu0 0.0
    %278 = vmatpush1.msra.mxu0 %v254
    %279 = vmatprep.subr.mxu0 0.0
    %280 = vmatpush1.msra.mxu0 %v255
    %281 = vmatprep.subr.mxu0 0.0
    %282 = vmatpush1.msra.mxu0 %v256
    %283 = vmatprep.subr.mxu0 0.0
    %284 = vmatpush1.msra.mxu0 %v257
    %285 = vmatprep.subr.mxu0 0.0
    %286 = vmatpush1.msra.mxu0 %v258
    %287 = vmatprep.subr.mxu0 0.0
    %288 = vmatpush1.msra.mxu0 %v259
    %289 = vmatprep.subr.mxu0 0.0
    %290 = vmatpush1.msra.mxu0 %v260
    %291 = vmatprep.subr.mxu0 0.0
    %292 = vmatpush1.msra.mxu0 %v261
    %293 = vmatprep.subr.mxu0 0.0
    %294 = vmatpush1.msra.mxu0 %v262
    %295 = vmatprep.subr.mxu0 0.0
    %296 = vmatpush1.msra.mxu0 %v263
    %297 = vmatprep.subr.mxu0 0.0
    %298 = vmatpush1.msra.mxu0 %v264
    %299 = vmatprep.subr.mxu0 0.0
    %300 = vmatpush1.msra.mxu0 %v265
    %301 = vmatprep.subr.mxu0 0.0
    %302 = vmatpush1.msra.mxu0 %v266
    %303 = vmatprep.subr.mxu0 0.0
    %304 = vmatpush1.msra.mxu0 %v267
    %305 = vmatprep.subr.mxu0 0.0
    %306 = vmatpush1.msra.mxu0 0.0
    %307 = vmatprep.subr.mxu0 0.0
    %308 = vmatpush1.msra.mxu0 0.0
    %309 = vmatprep.subr.mxu0 0.0
    %310 = vmatpush1.msra.mxu0 0.0
    %311 = vmatprep.subr.mxu0 0.0
    %312 = vmatpush1.msra.mxu0 0.0
    %313 = vmatprep.subr.mxu0 0.0
    %314 = vmatpush1.msra.mxu0 0.0
    %315 = vmatprep.subr.mxu0 0.0
    %316 = vmatpush1.msra.mxu0 0.0
    %317 = vmatprep.subr.mxu0 0.0
    %318 = vmatpush1.msra.mxu0 0.0
    %319 = vmatprep.subr.mxu0 0.0
    %320 = vmatpush1.msra.mxu0 0.0
    %321 = vmatprep.subr.mxu0 0.0
    %322 = vmatpush1.msra.mxu0 0.0
    %323 = vmatprep.subr.mxu0 0.0
    %324 = vmatpush1.msra.mxu0 0.0
    %325 = vmatprep.subr.mxu0 0.0
    %326 = vmatpush1.msra.mxu0 0.0
    %327 = vmatprep.subr.mxu0 0.0
    %328 = vmatpush1.msra.mxu0 0.0
    %329 = vmatprep.subr.mxu0 0.0
    %330 = vmatpush1.msra.mxu0 0.0
    %331 = vmatprep.subr.mxu0 0.0
    %332 = vmatpush1.msra.mxu0 0.0
    %333 = vmatprep.subr.mxu0 0.0
    %334 = vmatpush1.msra.mxu0 0.0
    %335 = vmatprep.subr.mxu0 0.0
    %336 = vmatpush1.msra.mxu0 0.0
    %337 = vmatprep.mubr.f32.mxu0 0.0
    %338 = vmatmul.mubr.f32.gmra.mrb[0].mxu0 %v251
    %v339 = vpop.f32.mrb[0].mxu0
    %v340 = vadd.f32 %v272, %v339
    %v341 = vpop.f32.mrb[0].mxu0
    %342 = vdwg.mxu0
    %vm343 = vcmask 7168
    %344 = vst.msk [vmem:[%s5] sm:$0xff] %vm343, %v340
    // Predicated region
    $region38: #{tpu_custom_call.1} parent=1 // pred_check
      _
    $region39: #{tpu_custom_call.1} parent=1 // pred_check_branch
      %346 = sbr.rel (0) target = $region41
    $region40: #{tpu_custom_call.1} parent=1 // pred_region
      _
    $region41: #{tpu_custom_call.1} parent=1 // pred_fallthru
      _
    // Predicated region
    $region42: #{tpu_custom_call.1} parent=1 // pred_check
      _
    $region43: #{tpu_custom_call.1} parent=1 // pred_check_branch
      %348 = sbr.rel (0) target = $region45
    $region44: #{tpu_custom_call.1} parent=1 // pred_region
      _
    $region45: #{tpu_custom_call.1} parent=1 // pred_fallthru
      _
    %349 = vsyncpa [#allocation3], 1
    %350 = vsyncpa [#allocation5], 1
    %351 = vsyncpa [#allocation8], 1

</llo_original>
